<compile_context>
chip_gen: v5e
topology: v5e:2x2
jax: 0.10.0
libtpu: 0.0.40
codegen_flags: <defaults>
</compile_context>

<pallas_src>
import functools

import jax
import jax.numpy as jnp
from jax.experimental import pallas as pl
from jax.experimental.pallas import tpu as pltpu


# -----------------------------------------------------------------------------
# Fused kernel: all GCN layers + readout for one block of `block_b` graphs.
# -----------------------------------------------------------------------------
def _gcn_fused_kernel(L_ref, s_ref, *rest, num_layer, num_edge, dims, block_b, N):
    out_ref = rest[-1]
    wrefs = rest[:-1]          # [W0, b0, W1, b1, ..., W_ro, b_ro]

    Lb = L_ref[...]                                       # (block_b, E+1, N, N) f32
    state = s_ref[...].reshape(block_b * N, dims[0])      # (block_b*N, Din)

    for t in range(num_layer):
        din, dout = dims[t], dims[t + 1]
        Wp = wrefs[2 * t][...]                            # (din, (E+1)*dout)
        bias = wrefs[2 * t + 1][...]                      # (1, dout)

        # One wide dense projection for the whole block (fills MXU rows).
        SW = jnp.dot(state, Wp, preferred_element_type=jnp.float32)  # (bB*N, (E+1)*dout)

        def edge_term(e):
            SW_e = SW[:, e * dout:(e + 1) * dout].reshape(block_b, N, dout)
            return jnp.einsum("bij,bjd->bid", Lb[:, e], SW_e,
                              preferred_element_type=jnp.float32)

        acc = edge_term(0)
        for e in range(1, num_edge):
            acc = acc + edge_term(e)

        state = jnp.maximum(acc.reshape(block_b * N, dout) + bias, 0.0)
        # dropout p = 0.0 -> identity (training-mode dropout with p=0 is a no-op)

    # Readout: one fused dot against [W_out | W_att], sigmoid on EUP, mean over nodes.
    W_ro = wrefs[2 * num_layer][...]                      # (H, P+1)
    b_ro = wrefs[2 * num_layer + 1][...]                  # (1, P+1)
    Z = jnp.dot(state, W_ro, preferred_element_type=jnp.float32) + b_ro
    P = W_ro.shape[1] - 1
    y = Z[:, :P]                                          # (bB*N, P)
    att = jax.nn.sigmoid(Z[:, P:P + 1])                   # (bB*N, 1)
    weighted = (att * y).reshape(block_b, N, P)
    out_ref[...] = jnp.mean(weighted, axis=1)             # (block_b, P)


def gcn_forward(params, node_feat, L, *, block_b=None):
    """node_feat: (B, N) int32, L: (B, N, N, E+1) float32 -> score (B, P)."""
    B, N = node_feat.shape
    E1 = L.shape[-1]

    # Embedding gather (tiny glue op, data-dependent gather kept in JAX).
    state0 = params["embedding"][node_feat].astype(jnp.float32)     # (B, N, Din)
    # One-time adjacency relayout so each edge type is a contiguous N x N slab.
    # TODO(synk): for very large N this transpose could be fused into the kernel
    # to avoid one extra HBM pass over L.
    Lt = jnp.transpose(L, (0, 3, 1, 2)).astype(jnp.float32)          # (B, E+1, N, N)

    filters = params["filters"]
    num_layer = len(filters)
    dims = [state0.shape[-1]] + [W.shape[-1] for W, _ in filters]

    # Relayout each filter weight: ((E+1)*din, dout) -> (din, (E+1)*dout)
    # (column-block e equals the original row-block W_e; math is identical).
    weight_args = []
    wide_shapes = []
    for (W, b), din in zip(filters, dims[:-1]):
        dout = W.shape[-1]
        Wp = W.reshape(E1, din, dout).transpose(1, 0, 2).reshape(din, E1 * dout)
        weight_args += [Wp, b]
        wide_shapes += [Wp.shape, b.shape]

    Wo, bo = params["out"]
    Wa, ba = params["att"]
    W_ro = jnp.concatenate([Wo, Wa], axis=1)             # (H, P+1)
    b_ro = jnp.concatenate([bo, ba], axis=1)             # (1, P+1)
    weight_args += [W_ro, b_ro]
    wide_shapes += [W_ro.shape, b_ro.shape]
    P = Wo.shape[-1]

    if block_b is None:
        cap = max(1, 256 // max(N, 1))                   # aim for ~256 stacked rows
        block_b = max(d for d in range(1, B + 1) if B % d == 0 and d <= cap)
    assert B % block_b == 0

    kernel = functools.partial(_gcn_fused_kernel, num_layer=num_layer,
                               num_edge=E1, dims=tuple(dims),
                               block_b=block_b, N=N)

    in_specs = [
        pl.BlockSpec((block_b, E1, N, N), lambda i: (i, 0, 0, 0)),
        pl.BlockSpec((block_b, N, dims[0]), lambda i: (i, 0, 0)),
    ]
    for shp in wide_shapes:
        in_specs.append(pl.BlockSpec(shp, lambda i: (0, 0)))

    return pl.pallas_call(
        kernel,
        out_shape=jax.ShapeDtypeStruct((B, P), jnp.float32),
        grid_spec=pltpu.PrefetchScalarGridSpec(
            num_scalar_prefetch=0,
            grid=(B // block_b,),
            in_specs=in_specs,
            out_specs=pl.BlockSpec((block_b, P), lambda i: (i, 0)),
        ),
        compiler_params=pltpu.CompilerParams(
            dimension_semantics=("parallel",)),
    )(Lt, state0, *weight_args)


# -----------------------------------------------------------------------------
# Parameter construction (deterministic, mirrors GCN._init_param)
# -----------------------------------------------------------------------------
def xavier_uniform(key, fan_in, fan_out):
    bound = (6.0 / (fan_in + fan_out)) ** 0.5
    return jax.random.uniform(key, (fan_in, fan_out), jnp.float32, -bound, bound)


def init_params(key, num_atom, input_dim, hidden_dim, output_dim, num_layer,
                num_edgetype):
    dim_list = [input_dim] + list(hidden_dim) + [output_dim]
    keys = jax.random.split(key, num_layer + 3)
    params = {}
    params["embedding"] = jax.random.normal(
        keys[0], (num_atom, input_dim), jnp.float32)      # nn.Embedding ~ N(0,1)
    filters = []
    for tt in range(num_layer):
        fan_in = dim_list[tt] * (num_edgetype + 1)
        fan_out = dim_list[tt + 1]
        W = xavier_uniform(keys[1 + tt], fan_in, fan_out)
        b = jnp.zeros((1, fan_out), jnp.float32)
        filters.append((W, b))
    params["filters"] = filters
    params["out"] = (xavier_uniform(keys[num_layer + 1], dim_list[-2], dim_list[-1]),
                     jnp.zeros((1, dim_list[-1]), jnp.float32))
    params["att"] = (xavier_uniform(keys[num_layer + 2], dim_list[-2], 1),
                     jnp.zeros((1, 1), jnp.float32))
    return params


# -----------------------------------------------------------------------------
# Pure-JAX reference (exactly mirrors GCN.forward with mask=None, label=None)
# -----------------------------------------------------------------------------
def gcn_reference(params, node_feat, L):
    state = params["embedding"][node_feat]
    B, N, _ = state.shape
    E1 = L.shape[-1]
    for W, b in params["filters"]:
        msg = jnp.concatenate(
            [jnp.einsum("bij,bjd->bid", L[..., ii], state) for ii in range(E1)],
            axis=-1)
        state = jax.nn.relu(msg.reshape(B * N, -1) @ W + b).reshape(B, N, -1)
    Wo, bo = params["out"]
    Wa, ba = params["att"]
    flat = state.reshape(B * N, -1)
    y = flat @ Wo + bo
    att = jax.nn.sigmoid(flat @ Wa + ba)
    y = (att * y).reshape(B, N, -1)
    return jnp.mean(y, axis=1)


if __name__ == "__main__":
    # Small config consistent with the module's shape conventions.
    B, N = 2, 8
    num_atom = 10
    input_dim = 16
    hidden_dim = [32, 32]
    output_dim = 8
    num_layer = 2
    num_edgetype = 2                      # E; L has E+1 = 3 slices

    key = jax.random.PRNGKey(0)
    kp, kf, kl, km = jax.random.split(key, 4)

    params = init_params(kp, num_atom, input_dim, hidden_dim, output_dim,
                         num_layer, num_edgetype)

    node_feat = jax.random.randint(kf, (B, N), 0, num_atom, dtype=jnp.int32)
    L_vals = jax.random.normal(kl, (B, N, N, num_edgetype + 1), jnp.float32)
    L_mask = jax.random.bernoulli(km, 0.5, (B, N, N, num_edgetype + 1))
    L = L_vals * L_mask.astype(jnp.float32)   # used RAW, exactly like the module

    score = gcn_forward(params, node_feat, L)
    score = jax.block_until_ready(score)

    ref = gcn_reference(params, node_feat, L)
    assert score.shape == (B, output_dim)
    assert jnp.allclose(score, ref, atol=1e-4, rtol=1e-4), (score, ref)

    # TODO(synk): mask / label / loss branches of GCN.forward not exercised
    # (mask=None, label=None path only).
    print("KERNEL_OK")
</pallas_src>

<mosaic_0001>
module attributes {stable_mosaic.version = 11 : i64} {
  func.func @_gcn_fused_kernel(%arg0: i32, %arg1: memref<2x3x8x8xf32, #tpu.memory_space<vmem>>, %arg2: memref<2x8x16xf32, #tpu.memory_space<vmem>>, %arg3: memref<16x96xf32, #tpu.memory_space<vmem>>, %arg4: memref<1x32xf32, #tpu.memory_space<vmem>>, %arg5: memref<32x96xf32, #tpu.memory_space<vmem>>, %arg6: memref<1x32xf32, #tpu.memory_space<vmem>>, %arg7: memref<32x9xf32, #tpu.memory_space<vmem>>, %arg8: memref<1x9xf32, #tpu.memory_space<vmem>>, %arg9: memref<2x8xf32, #tpu.memory_space<vmem>>) attributes {dimension_semantics = [#tpu.dimension_semantics<parallel>], iteration_bounds = array<i64: 1>, scalar_prefetch = 0 : i64, scratch_operands = 0 : i64, tpu.core_type = #tpu.core_type<tc>, window_params = [{transform_indices = @transform_0, window_bounds = array<i64: 2, 3, 8, 8>}, {transform_indices = @transform_1, window_bounds = array<i64: 2, 8, 16>}, {pipeline_mode = #tpu.pipeline_mode<synchronous>, transform_indices = @transform_2, window_bounds = array<i64: 16, 96>}, {pipeline_mode = #tpu.pipeline_mode<synchronous>, transform_indices = @transform_3, window_bounds = array<i64: 1, 32>}, {pipeline_mode = #tpu.pipeline_mode<synchronous>, transform_indices = @transform_4, window_bounds = array<i64: 32, 96>}, {pipeline_mode = #tpu.pipeline_mode<synchronous>, transform_indices = @transform_5, window_bounds = array<i64: 1, 32>}, {pipeline_mode = #tpu.pipeline_mode<synchronous>, transform_indices = @transform_6, window_bounds = array<i64: 32, 9>}, {pipeline_mode = #tpu.pipeline_mode<synchronous>, transform_indices = @transform_7, window_bounds = array<i64: 1, 9>}, {transform_indices = @transform_8, window_bounds = array<i64: 2, 8>}]} {
    %c0 = arith.constant 0 : index
    %c0_0 = arith.constant 0 : index
    %c0_1 = arith.constant 0 : index
    %c0_2 = arith.constant 0 : index
    %0 = vector.load %arg1[%c0, %c0_0, %c0_1, %c0_2] : memref<2x3x8x8xf32, #tpu.memory_space<vmem>>, vector<2x3x8x8xf32>
    %c0_3 = arith.constant 0 : index
    %c0_4 = arith.constant 0 : index
    %c0_5 = arith.constant 0 : index
    %1 = vector.load %arg2[%c0_3, %c0_4, %c0_5] : memref<2x8x16xf32, #tpu.memory_space<vmem>>, vector<2x8x16xf32>
    %2 = vector.shape_cast %1 : vector<2x8x16xf32> to vector<16x16xf32>
    %c0_6 = arith.constant 0 : index
    %c0_7 = arith.constant 0 : index
    %3 = vector.load %arg3[%c0_6, %c0_7] : memref<16x96xf32, #tpu.memory_space<vmem>>, vector<16x96xf32>
    %c0_8 = arith.constant 0 : index
    %c0_9 = arith.constant 0 : index
    %4 = vector.load %arg4[%c0_8, %c0_9] : memref<1x32xf32, #tpu.memory_space<vmem>>, vector<1x32xf32>
    %cst = arith.constant dense<0.000000e+00> : vector<16x96xf32>
    %5 = tpu.matmul %2, %3, %cst {dimension_numbers = #tpu.dot_dimension_numbers<[1], [0], [0], [1], [0, 0, 1, 1], [], []>} : vector<16x16xf32>, vector<16x96xf32>, vector<16x96xf32> -> vector<16x96xf32>
    %6 = vector.extract_strided_slice %5 {offsets = [0, 0], sizes = [16, 32], strides = [1, 1]} : vector<16x96xf32> to vector<16x32xf32>
    %7 = vector.shape_cast %6 : vector<16x32xf32> to vector<2x8x32xf32>
    %8 = vector.extract_strided_slice %0 {offsets = [0, 0, 0, 0], sizes = [2, 1, 8, 8], strides = [1, 1, 1, 1]} : vector<2x3x8x8xf32> to vector<2x1x8x8xf32>
    %9 = vector.shape_cast %8 : vector<2x1x8x8xf32> to vector<2x8x8xf32>
    "tpu.trace_start"() <{level = 10 : i32, message = "bij,bjd->bid"}> : () -> ()
    %cst_10 = arith.constant dense<0.000000e+00> : vector<2x8x32xf32>
    %10 = tpu.matmul %9, %7, %cst_10 {dimension_numbers = #tpu.dot_dimension_numbers<[2], [1], [1], [2], [0, 0, 0, 1, 1, 2], [0], [0]>} : vector<2x8x8xf32>, vector<2x8x32xf32>, vector<2x8x32xf32> -> vector<2x8x32xf32>
    "tpu.trace_stop"() : () -> ()
    %11 = vector.extract_strided_slice %5 {offsets = [0, 32], sizes = [16, 32], strides = [1, 1]} : vector<16x96xf32> to vector<16x32xf32>
    %12 = vector.shape_cast %11 : vector<16x32xf32> to vector<2x8x32xf32>
    %13 = vector.extract_strided_slice %0 {offsets = [0, 1, 0, 0], sizes = [2, 1, 8, 8], strides = [1, 1, 1, 1]} : vector<2x3x8x8xf32> to vector<2x1x8x8xf32>
    %14 = vector.shape_cast %13 : vector<2x1x8x8xf32> to vector<2x8x8xf32>
    "tpu.trace_start"() <{level = 10 : i32, message = "bij,bjd->bid"}> : () -> ()
    %cst_11 = arith.constant dense<0.000000e+00> : vector<2x8x32xf32>
    %15 = tpu.matmul %14, %12, %cst_11 {dimension_numbers = #tpu.dot_dimension_numbers<[2], [1], [1], [2], [0, 0, 0, 1, 1, 2], [0], [0]>} : vector<2x8x8xf32>, vector<2x8x32xf32>, vector<2x8x32xf32> -> vector<2x8x32xf32>
    "tpu.trace_stop"() : () -> ()
    %16 = arith.addf %10, %15 : vector<2x8x32xf32>
    %17 = vector.extract_strided_slice %5 {offsets = [0, 64], sizes = [16, 32], strides = [1, 1]} : vector<16x96xf32> to vector<16x32xf32>
    %18 = vector.shape_cast %17 : vector<16x32xf32> to vector<2x8x32xf32>
    %19 = vector.extract_strided_slice %0 {offsets = [0, 2, 0, 0], sizes = [2, 1, 8, 8], strides = [1, 1, 1, 1]} : vector<2x3x8x8xf32> to vector<2x1x8x8xf32>
    %20 = vector.shape_cast %19 : vector<2x1x8x8xf32> to vector<2x8x8xf32>
    "tpu.trace_start"() <{level = 10 : i32, message = "bij,bjd->bid"}> : () -> ()
    %cst_12 = arith.constant dense<0.000000e+00> : vector<2x8x32xf32>
    %21 = tpu.matmul %20, %18, %cst_12 {dimension_numbers = #tpu.dot_dimension_numbers<[2], [1], [1], [2], [0, 0, 0, 1, 1, 2], [0], [0]>} : vector<2x8x8xf32>, vector<2x8x32xf32>, vector<2x8x32xf32> -> vector<2x8x32xf32>
    "tpu.trace_stop"() : () -> ()
    %22 = arith.addf %16, %21 : vector<2x8x32xf32>
    %23 = vector.shape_cast %22 : vector<2x8x32xf32> to vector<16x32xf32>
    %24 = vector.broadcast %4 : vector<1x32xf32> to vector<16x32xf32>
    %25 = arith.addf %23, %24 : vector<16x32xf32>
    %cst_13 = arith.constant 0.000000e+00 : f32
    %26 = vector.broadcast %cst_13 : f32 to vector<16x32xf32>
    %27 = arith.maximumf %25, %26 : vector<16x32xf32>
    %c0_14 = arith.constant 0 : index
    %c0_15 = arith.constant 0 : index
    %28 = vector.load %arg5[%c0_14, %c0_15] : memref<32x96xf32, #tpu.memory_space<vmem>>, vector<32x96xf32>
    %c0_16 = arith.constant 0 : index
    %c0_17 = arith.constant 0 : index
    %29 = vector.load %arg6[%c0_16, %c0_17] : memref<1x32xf32, #tpu.memory_space<vmem>>, vector<1x32xf32>
    %cst_18 = arith.constant dense<0.000000e+00> : vector<16x96xf32>
    %30 = tpu.matmul %27, %28, %cst_18 {dimension_numbers = #tpu.dot_dimension_numbers<[1], [0], [0], [1], [0, 0, 1, 1], [], []>} : vector<16x32xf32>, vector<32x96xf32>, vector<16x96xf32> -> vector<16x96xf32>
    %31 = vector.extract_strided_slice %30 {offsets = [0, 0], sizes = [16, 32], strides = [1, 1]} : vector<16x96xf32> to vector<16x32xf32>
    %32 = vector.shape_cast %31 : vector<16x32xf32> to vector<2x8x32xf32>
    %33 = vector.extract_strided_slice %0 {offsets = [0, 0, 0, 0], sizes = [2, 1, 8, 8], strides = [1, 1, 1, 1]} : vector<2x3x8x8xf32> to vector<2x1x8x8xf32>
    %34 = vector.shape_cast %33 : vector<2x1x8x8xf32> to vector<2x8x8xf32>
    "tpu.trace_start"() <{level = 10 : i32, message = "bij,bjd->bid"}> : () -> ()
    %cst_19 = arith.constant dense<0.000000e+00> : vector<2x8x32xf32>
    %35 = tpu.matmul %34, %32, %cst_19 {dimension_numbers = #tpu.dot_dimension_numbers<[2], [1], [1], [2], [0, 0, 0, 1, 1, 2], [0], [0]>} : vector<2x8x8xf32>, vector<2x8x32xf32>, vector<2x8x32xf32> -> vector<2x8x32xf32>
    "tpu.trace_stop"() : () -> ()
    %36 = vector.extract_strided_slice %30 {offsets = [0, 32], sizes = [16, 32], strides = [1, 1]} : vector<16x96xf32> to vector<16x32xf32>
    %37 = vector.shape_cast %36 : vector<16x32xf32> to vector<2x8x32xf32>
    %38 = vector.extract_strided_slice %0 {offsets = [0, 1, 0, 0], sizes = [2, 1, 8, 8], strides = [1, 1, 1, 1]} : vector<2x3x8x8xf32> to vector<2x1x8x8xf32>
    %39 = vector.shape_cast %38 : vector<2x1x8x8xf32> to vector<2x8x8xf32>
    "tpu.trace_start"() <{level = 10 : i32, message = "bij,bjd->bid"}> : () -> ()
    %cst_20 = arith.constant dense<0.000000e+00> : vector<2x8x32xf32>
    %40 = tpu.matmul %39, %37, %cst_20 {dimension_numbers = #tpu.dot_dimension_numbers<[2], [1], [1], [2], [0, 0, 0, 1, 1, 2], [0], [0]>} : vector<2x8x8xf32>, vector<2x8x32xf32>, vector<2x8x32xf32> -> vector<2x8x32xf32>
    "tpu.trace_stop"() : () -> ()
    %41 = arith.addf %35, %40 : vector<2x8x32xf32>
    %42 = vector.extract_strided_slice %30 {offsets = [0, 64], sizes = [16, 32], strides = [1, 1]} : vector<16x96xf32> to vector<16x32xf32>
    %43 = vector.shape_cast %42 : vector<16x32xf32> to vector<2x8x32xf32>
    %44 = vector.extract_strided_slice %0 {offsets = [0, 2, 0, 0], sizes = [2, 1, 8, 8], strides = [1, 1, 1, 1]} : vector<2x3x8x8xf32> to vector<2x1x8x8xf32>
    %45 = vector.shape_cast %44 : vector<2x1x8x8xf32> to vector<2x8x8xf32>
    "tpu.trace_start"() <{level = 10 : i32, message = "bij,bjd->bid"}> : () -> ()
    %cst_21 = arith.constant dense<0.000000e+00> : vector<2x8x32xf32>
    %46 = tpu.matmul %45, %43, %cst_21 {dimension_numbers = #tpu.dot_dimension_numbers<[2], [1], [1], [2], [0, 0, 0, 1, 1, 2], [0], [0]>} : vector<2x8x8xf32>, vector<2x8x32xf32>, vector<2x8x32xf32> -> vector<2x8x32xf32>
    "tpu.trace_stop"() : () -> ()
    %47 = arith.addf %41, %46 : vector<2x8x32xf32>
    %48 = vector.shape_cast %47 : vector<2x8x32xf32> to vector<16x32xf32>
    %49 = vector.broadcast %29 : vector<1x32xf32> to vector<16x32xf32>
    %50 = arith.addf %48, %49 : vector<16x32xf32>
    %cst_22 = arith.constant 0.000000e+00 : f32
    %51 = vector.broadcast %cst_22 : f32 to vector<16x32xf32>
    %52 = arith.maximumf %50, %51 : vector<16x32xf32>
    %c0_23 = arith.constant 0 : index
    %c0_24 = arith.constant 0 : index
    %53 = vector.load %arg7[%c0_23, %c0_24] : memref<32x9xf32, #tpu.memory_space<vmem>>, vector<32x9xf32>
    %c0_25 = arith.constant 0 : index
    %c0_26 = arith.constant 0 : index
    %54 = vector.load %arg8[%c0_25, %c0_26] : memref<1x9xf32, #tpu.memory_space<vmem>>, vector<1x9xf32>
    %cst_27 = arith.constant dense<0.000000e+00> : vector<16x9xf32>
    %55 = tpu.matmul %52, %53, %cst_27 {dimension_numbers = #tpu.dot_dimension_numbers<[1], [0], [0], [1], [0, 0, 1, 1], [], []>} : vector<16x32xf32>, vector<32x9xf32>, vector<16x9xf32> -> vector<16x9xf32>
    %56 = vector.broadcast %54 : vector<1x9xf32> to vector<16x9xf32>
    %57 = arith.addf %55, %56 : vector<16x9xf32>
    %58 = vector.extract_strided_slice %57 {offsets = [0, 0], sizes = [16, 8], strides = [1, 1]} : vector<16x9xf32> to vector<16x8xf32>
    %59 = vector.extract_strided_slice %57 {offsets = [0, 8], sizes = [16, 1], strides = [1, 1]} : vector<16x9xf32> to vector<16x1xf32>
    %60 = arith.negf %59 : vector<16x1xf32>
    %61 = math.exp %60 : vector<16x1xf32>
    %cst_28 = arith.constant 1.000000e+00 : f32
    %62 = vector.broadcast %cst_28 : f32 to vector<16x1xf32>
    %63 = arith.addf %62, %61 : vector<16x1xf32>
    %64 = arith.divf %62, %63 : vector<16x1xf32>
    %65 = vector.broadcast %64 : vector<16x1xf32> to vector<16x8xf32>
    %66 = arith.mulf %65, %58 : vector<16x8xf32>
    %67 = vector.shape_cast %66 : vector<16x8xf32> to vector<2x8x8xf32>
    %cst_29 = arith.constant dense<0.000000e+00> : vector<2x8xf32>
    %68 = vector.multi_reduction <add>, %67, %cst_29 [1] : vector<2x8x8xf32> to vector<2x8xf32>
    %cst_30 = arith.constant 8.000000e+00 : f32
    %69 = vector.broadcast %cst_30 : f32 to vector<2x8xf32>
    %70 = arith.divf %68, %69 : vector<2x8xf32>
    %c0_31 = arith.constant 0 : index
    %c0_32 = arith.constant 0 : index
    %71 = vector.load %arg9[%c0_31, %c0_32] : memref<2x8xf32, #tpu.memory_space<vmem>>, vector<2x8xf32>
    tpu.vector_store %arg9[%c0_31, %c0_32], %70 {strides = array<i32>} : memref<2x8xf32, #tpu.memory_space<vmem>>, vector<2x8xf32>,
    return
  }
  func.func @transform_0(%arg0: i32) -> (i32, i32, i32, i32) {
    %c0_i32 = arith.constant 0 : i32
    %c0_i32_0 = arith.constant 0 : i32
    %c0_i32_1 = arith.constant 0 : i32
    %c0_i32_2 = arith.constant 0 : i32
    return %arg0, %c0_i32, %c0_i32_0, %c0_i32_1 : i32, i32, i32, i32
  }
  func.func @transform_1(%arg0: i32) -> (i32, i32, i32) {
    %c0_i32 = arith.constant 0 : i32
    %c0_i32_0 = arith.constant 0 : i32
    %c0_i32_1 = arith.constant 0 : i32
    return %arg0, %c0_i32, %c0_i32_0 : i32, i32, i32
  }
  func.func @transform_2(%arg0: i32) -> (i32, i32) {
    %c0_i32 = arith.constant 0 : i32
    %c0_i32_0 = arith.constant 0 : i32
    %c0_i32_1 = arith.constant 0 : i32
    return %c0_i32, %c0_i32_0 : i32, i32
  }
  func.func @transform_3(%arg0: i32) -> (i32, i32) {
    %c0_i32 = arith.constant 0 : i32
    %c0_i32_0 = arith.constant 0 : i32
    %c0_i32_1 = arith.constant 0 : i32
    return %c0_i32, %c0_i32_0 : i32, i32
  }
  func.func @transform_4(%arg0: i32) -> (i32, i32) {
    %c0_i32 = arith.constant 0 : i32
    %c0_i32_0 = arith.constant 0 : i32
    %c0_i32_1 = arith.constant 0 : i32
    return %c0_i32, %c0_i32_0 : i32, i32
  }
  func.func @transform_5(%arg0: i32) -> (i32, i32) {
    %c0_i32 = arith.constant 0 : i32
    %c0_i32_0 = arith.constant 0 : i32
    %c0_i32_1 = arith.constant 0 : i32
    return %c0_i32, %c0_i32_0 : i32, i32
  }
  func.func @transform_6(%arg0: i32) -> (i32, i32) {
    %c0_i32 = arith.constant 0 : i32
    %c0_i32_0 = arith.constant 0 : i32
    %c0_i32_1 = arith.constant 0 : i32
    return %c0_i32, %c0_i32_0 : i32, i32
  }
  func.func @transform_7(%arg0: i32) -> (i32, i32) {
    %c0_i32 = arith.constant 0 : i32
    %c0_i32_0 = arith.constant 0 : i32
    %c0_i32_1 = arith.constant 0 : i32
    return %c0_i32, %c0_i32_0 : i32, i32
  }
  func.func @transform_8(%arg0: i32) -> (i32, i32) {
    %c0_i32 = arith.constant 0 : i32
    %c0_i32_0 = arith.constant 0 : i32
    return %arg0, %c0_i32 : i32, i32
  }
}

</mosaic_0001>

<llo_original>
// kernel: tpu_custom_call.1
$region0: #{tpu_custom_call.1}
  #allocation0 [shape = 'u32[]', space=smem, size = 0x4, offset = 0x4, fixed_abs, tag = 'smem constant byte address 0x4 - core index']
  #allocation1 [shape = 'u32[72,128]{1,0:T(1,128)}', space=vmem, size = 0x9000, scoped, tag = 'internal scratch']
  %s0 = inlined_call_operand.vmem [shape: f32[2,3,8,8], index: 0, kind: input, shape index: {}]
  %s1 = inlined_call_operand.hbm [shape: f32[2,8,16], index: 1, kind: input, shape index: {}]
  %s2 = inlined_call_operand.hbm [shape: f32[16,96], index: 2, kind: input, shape index: {}]
  %s3 = inlined_call_operand.vmem [shape: f32[1,32], index: 3, kind: input, shape index: {}]
  %s4 = inlined_call_operand.hbm [shape: f32[32,96], index: 4, kind: input, shape index: {}]
  %s5 = inlined_call_operand.vmem [shape: f32[1,32], index: 5, kind: input, shape index: {}]
  %s6 = inlined_call_operand.vmem [shape: f32[32,9], index: 6, kind: input, shape index: {}]
  %s7 = inlined_call_operand.vmem [shape: f32[1,9], index: 7, kind: input, shape index: {}]
  %s8 = inlined_call_operand.hbm [shape: f32[2,8], index: 8, kind: output, shape index: {}]
  %s9 = sld [smem:[#allocation0]]
  $region54: #{tpu_custom_call.1} parent=0
    _
  %s11 = ssub.s32 1, %s9
  %s12 = scalar_select 0, %s11, %s9
  $region1: #{tpu_custom_call.1} parent=0
    #allocation2 [shape = 'u8[8192]{0}', space=vmem, size = 0x2000, scoped, tag = 'input window, operand 1, single buffered']
    #allocation3 [shape = 's32[1]{0}', space=sflag, size = 0x4, scoped, tag = 'scoped memory for tpu_custom_call.1']
    #allocation4 [shape = 's32[1]{0}', space=sflag, size = 0x4, scoped, tag = 'scoped memory for tpu_custom_call.1']
    #allocation5 [shape = 'u8[8192]{0}', space=vmem, size = 0x2000, scoped, tag = 'input window, operand 2, single buffered']
    #allocation6 [shape = 's32[1]{0}', space=sflag, size = 0x4, scoped, tag = 'scoped memory for tpu_custom_call.1']
    #allocation7 [shape = 'u8[16384]{0}', space=vmem, size = 0x4000, scoped, tag = 'input window, operand 4, single buffered']
    #allocation8 [shape = 'u8[1024]{0}', space=vmem, size = 0x400, scoped, tag = 'output window, operand 0, single buffered']
    %13 = vsyncpa [#allocation3], 0
    %14 = vsyncpa [#allocation6], 0
    %15 = vsyncpa [#allocation4], 0
    // Predicated region
    $region2: #{tpu_custom_call.1} parent=1 // pred_check
      _
    $region3: #{tpu_custom_call.1} parent=1 // pred_check_branch
      %17 = sbr.rel (0) target = $region5
    $region4: #{tpu_custom_call.1} parent=1 // pred_region
      _
    $region5: #{tpu_custom_call.1} parent=1 // pred_fallthru
      _
    // Predicated region
    $region6: #{tpu_custom_call.1} parent=1 // pred_check
      _
    $region7: #{tpu_custom_call.1} parent=1 // pred_check_branch
      %19 = sbr.rel (0) target = $region9
    $region8: #{tpu_custom_call.1} parent=1 // pred_region
      %21 = vsyncadd [#allocation3], 0
      %s22 = sshll.u32 %s1, 4
      %s23 = int_to_ptr.hbm [resolvable:$true] %s22
      %s24 = sshll.u32 [#allocation2], 4
      %s25 = int_to_ptr.vmem [resolvable:$true] %s24
      %30 = dma.hbm_to_vmem [thread:$0]  %s23, 256, %s25, [#allocation3], 128, 128, 8
    $region9: #{tpu_custom_call.1} parent=1 // pred_fallthru
      _
    // Predicated region
    $region10: #{tpu_custom_call.1} parent=1 // pred_check
      _
    $region11: #{tpu_custom_call.1} parent=1 // pred_check_branch
      %32 = sbr.rel (0) target = $region13
    $region12: #{tpu_custom_call.1} parent=1 // pred_region
      %34 = vsyncadd [#allocation6], 0
      %s35 = sshll.u32 %s2, 4
      %s36 = int_to_ptr.hbm [resolvable:$true] %s35
      %s37 = sshll.u32 [#allocation5], 4
      %s38 = int_to_ptr.vmem [resolvable:$true] %s37
      %43 = dma.hbm_to_vmem [thread:$0]  %s36, 256, %s38, [#allocation6], 128, 128, 8
    $region13: #{tpu_custom_call.1} parent=1 // pred_fallthru
      _
    // Predicated region
    $region14: #{tpu_custom_call.1} parent=1 // pred_check
      _
    $region15: #{tpu_custom_call.1} parent=1 // pred_check_branch
      %45 = sbr.rel (0) target = $region17
    $region16: #{tpu_custom_call.1} parent=1 // pred_region
      _
    $region17: #{tpu_custom_call.1} parent=1 // pred_fallthru
      _
    // Predicated region
    $region18: #{tpu_custom_call.1} parent=1 // pred_check
      _
    $region19: #{tpu_custom_call.1} parent=1 // pred_check_branch
      %47 = sbr.rel (0) target = $region21
    $region20: #{tpu_custom_call.1} parent=1 // pred_region
      %49 = vsyncadd [#allocation6], 0
      %s50 = sshll.u32 %s4, 4
      %s51 = int_to_ptr.hbm [resolvable:$true] %s50
      %s52 = sshll.u32 [#allocation7], 4
      %s53 = int_to_ptr.vmem [resolvable:$true] %s52
      %58 = dma.hbm_to_vmem [thread:$0]  %s51, 512, %s53, [#allocation6], 128, 128, 8
    $region21: #{tpu_custom_call.1} parent=1 // pred_fallthru
      _
    // Predicated region
    $region22: #{tpu_custom_call.1} parent=1 // pred_check
      _
    $region23: #{tpu_custom_call.1} parent=1 // pred_check_branch
      %60 = sbr.rel (0) target = $region25
    $region24: #{tpu_custom_call.1} parent=1 // pred_region
      _
    $region25: #{tpu_custom_call.1} parent=1 // pred_fallthru
      _
    // Predicated region
    $region26: #{tpu_custom_call.1} parent=1 // pred_check
      _
    $region27: #{tpu_custom_call.1} parent=1 // pred_check_branch
      %62 = sbr.rel (0) target = $region29
    $region28: #{tpu_custom_call.1} parent=1 // pred_region
      _
    $region29: #{tpu_custom_call.1} parent=1 // pred_fallthru
      _
    // Predicated region
    $region30: #{tpu_custom_call.1} parent=1 // pred_check
      _
    $region31: #{tpu_custom_call.1} parent=1 // pred_check_branch
      %64 = sbr.rel (0) target = $region33
    $region32: #{tpu_custom_call.1} parent=1 // pred_region
      _
    $region33: #{tpu_custom_call.1} parent=1 // pred_fallthru
      _
    // Predicated region
    $region34: #{tpu_custom_call.1} parent=1 // pred_check
      _
    $region35: #{tpu_custom_call.1} parent=1 // pred_check_branch
      %66 = sbr.rel (0) target = $region37
    $region36: #{tpu_custom_call.1} parent=1 // pred_region
      %68 = dma.done [#allocation3], 256
    $region37: #{tpu_custom_call.1} parent=1 // pred_fallthru
      _
    // Predicated region
    $region38: #{tpu_custom_call.1} parent=1 // pred_check
      _
    $region39: #{tpu_custom_call.1} parent=1 // pred_check_branch
      %70 = sbr.rel (0) target = $region41
    $region40: #{tpu_custom_call.1} parent=1 // pred_region
      %72 = dma.done [#allocation6], 256
    $region41: #{tpu_custom_call.1} parent=1 // pred_fallthru
      _
    // Predicated region
    $region42: #{tpu_custom_call.1} parent=1 // pred_check
      _
    $region43: #{tpu_custom_call.1} parent=1 // pred_check_branch
      %74 = sbr.rel (0) target = $region45
    $region44: #{tpu_custom_call.1} parent=1 // pred_region
      %76 = dma.done [#allocation6], 512
    $region45: #{tpu_custom_call.1} parent=1 // pred_fallthru
      _
    %v77 = vld [vmem:[%s0] sm:$0xff]
    %v78 = vld [vmem:[%s0 + $0x8] sm:$0xff]
    %v79 = vld [vmem:[%s0 + $0x10] sm:$0xff]
    %v80 = vld [vmem:[%s0 + $0x18] sm:$0xff]
    %v81 = vld [vmem:[%s0 + $0x20] sm:$0xff]
    %v82 = vld [vmem:[%s0 + $0x28] sm:$0xff]
    %v83 = vld [vmem:[#allocation2] sm:$0xff]
    %v84 = vld [vmem:[#allocation2 + $0x8] sm:$0xff]
    %v85 = vld [vmem:[#allocation5] sm:$0xff]
    %v86 = vld [vmem:[#allocation5 + $0x8] sm:$0xff]
    %v87 = vld [vmem:[%s3] sm:$0x1]
    %vm88 = vcmask 130048
    %v90 = vsel %vm88, %v83, 0
    %v93 = vsel %vm88, %v84, 0
    %95 = vmatpush.msra.mxu0 0.0
    %96 = vmatpush.msra.mxu0 0.0
    %97 = vmatpush.msra.mxu0 0.0
    %98 = vmatpush.msra.mxu0 0.0
    %99 = vmatpush.msra.mxu0 0.0
    %100 = vmatpush.msra.mxu0 0.0
    %101 = vmatpush.msra.mxu0 0.0
    %102 = vmatpush.msra.mxu0 0.0
    %103 = vmatpush.msra.mxu0 0.0
    %104 = vmatpush.msra.mxu0 0.0
    %105 = vmatpush.msra.mxu0 0.0
    %106 = vmatpush.msra.mxu0 0.0
    %107 = vmatpush.msra.mxu0 0.0
    %108 = vmatpush.msra.mxu0 0.0
    %109 = vmatpush.msra.mxu0 %v86
    %110 = vmatpush.msra.mxu0 %v85
    %111 = vmatmul.f32.gmra.mxu0 %v90
    %v112 = vpop.f32.mrf.mxu0
    %v113 = vadd.f32 0.0, %v112
    %114 = vmatmul.f32.gmra.mxu0 %v93
    %v115 = vpop.f32.mrf.mxu0
    %v116 = vadd.f32 0.0, %v115
    %117 = vdwg.mxu0
    %119 = vrot.lane.b32.xlu0 %v113, 96
    %v120 = vpop.permute.xlu0 %119
    %vm122 = vcmask 64512
    %v124 = vsel %vm122, %v78, 0
    %126 = vmatpush.msra.mxu0 0.0
    %127 = vmatpush.msra.mxu0 0.0
    %128 = vmatpush.msra.mxu0 0.0
    %129 = vmatpush.msra.mxu0 0.0
    %130 = vmatpush.msra.mxu0 0.0
    %131 = vmatpush.msra.mxu0 0.0
    %132 = vmatpush.msra.mxu0 0.0
    %133 = vmatpush.msra.mxu0 0.0
    %134 = vmatpush.msra.mxu0 0.0
    %135 = vmatpush.msra.mxu0 0.0
    %136 = vmatpush.msra.mxu0 0.0
    %137 = vmatpush.msra.mxu0 0.0
    %138 = vmatpush.msra.mxu0 0.0
    %139 = vmatpush.msra.mxu0 0.0
    %140 = vmatpush.msra.mxu0 0.0
    %141 = vmatpush.msra.mxu0 %v120
    %142 = vmatmul.f32.gmra.mxu0 %v124
    %v143 = vpop.f32.mrf.mxu0
    %v144 = vadd.f32 0.0, %v143
    %145 = vdwg.mxu0
    %147 = vrot.lane.b32.xlu0 %v116, 96
    %v148 = vpop.permute.xlu0 %147
    %v151 = vsel %vm122, %v81, 0
    %153 = vmatpush.msra.mxu0 0.0
    %154 = vmatpush.msra.mxu0 0.0
    %155 = vmatpush.msra.mxu0 0.0
    %156 = vmatpush.msra.mxu0 0.0
    %157 = vmatpush.msra.mxu0 0.0
    %158 = vmatpush.msra.mxu0 0.0
    %159 = vmatpush.msra.mxu0 0.0
    %160 = vmatpush.msra.mxu0 0.0
    %161 = vmatpush.msra.mxu0 0.0
    %162 = vmatpush.msra.mxu0 0.0
    %163 = vmatpush.msra.mxu0 0.0
    %164 = vmatpush.msra.mxu0 0.0
    %165 = vmatpush.msra.mxu0 0.0
    %166 = vmatpush.msra.mxu0 0.0
    %167 = vmatpush.msra.mxu0 0.0
    %168 = vmatpush.msra.mxu0 %v148
    %169 = vmatmul.f32.gmra.mxu0 %v151
    %v170 = vpop.f32.mrf.mxu0
    %v171 = vadd.f32 0.0, %v170
    %172 = vdwg.mxu0
    %v174 = vsel %vm122, %v77, 0
    %176 = vmatpush.msra.mxu0 0.0
    %177 = vmatpush.msra.mxu0 0.0
    %178 = vmatpush.msra.mxu0 0.0
    %179 = vmatpush.msra.mxu0 0.0
    %180 = vmatpush.msra.mxu0 0.0
    %181 = vmatpush.msra.mxu0 0.0
    %182 = vmatpush.msra.mxu0 0.0
    %183 = vmatpush.msra.mxu0 0.0
    %184 = vmatpush.msra.mxu0 0.0
    %185 = vmatpush.msra.mxu0 0.0
    %186 = vmatpush.msra.mxu0 0.0
    %187 = vmatpush.msra.mxu0 0.0
    %188 = vmatpush.msra.mxu0 0.0
    %189 = vmatpush.msra.mxu0 0.0
    %190 = vmatpush.msra.mxu0 0.0
    %191 = vmatpush.msra.mxu0 %v113
    %192 = vmatmul.f32.gmra.mxu0 %v174
    %v193 = vpop.f32.mrf.mxu0
    %v194 = vadd.f32 %v144, %v193
    %195 = vdwg.mxu0
    %v197 = vsel %vm122, %v80, 0
    %199 = vmatpush.msra.mxu0 0.0
    %200 = vmatpush.msra.mxu0 0.0
    %201 = vmatpush.msra.mxu0 0.0
    %202 = vmatpush.msra.mxu0 0.0
    %203 = vmatpush.msra.mxu0 0.0
    %204 = vmatpush.msra.mxu0 0.0
    %205 = vmatpush.msra.mxu0 0.0
    %206 = vmatpush.msra.mxu0 0.0
    %207 = vmatpush.msra.mxu0 0.0
    %208 = vmatpush.msra.mxu0 0.0
    %209 = vmatpush.msra.mxu0 0.0
    %210 = vmatpush.msra.mxu0 0.0
    %211 = vmatpush.msra.mxu0 0.0
    %212 = vmatpush.msra.mxu0 0.0
    %213 = vmatpush.msra.mxu0 0.0
    %214 = vmatpush.msra.mxu0 %v116
    %215 = vmatmul.f32.gmra.mxu0 %v197
    %v216 = vpop.f32.mrf.mxu0
    %v217 = vadd.f32 %v171, %v216
    %218 = vdwg.mxu0
    %219 = vrot.lane.b32.xlu0 %v113, 64
    %v220 = vpop.permute.xlu0 %219
    %v223 = vsel %vm122, %v79, 0
    %225 = vmatpush.msra.mxu0 0.0
    %226 = vmatpush.msra.mxu0 0.0
    %227 = vmatpush.msra.mxu0 0.0
    %228 = vmatpush.msra.mxu0 0.0
    %229 = vmatpush.msra.mxu0 0.0
    %230 = vmatpush.msra.mxu0 0.0
    %231 = vmatpush.msra.mxu0 0.0
    %232 = vmatpush.msra.mxu0 0.0
    %233 = vmatpush.msra.mxu0 0.0
    %234 = vmatpush.msra.mxu0 0.0
    %235 = vmatpush.msra.mxu0 0.0
    %236 = vmatpush.msra.mxu0 0.0
    %237 = vmatpush.msra.mxu0 0.0
    %238 = vmatpush.msra.mxu0 0.0
    %239 = vmatpush.msra.mxu0 0.0
    %240 = vmatpush.msra.mxu0 %v220
    %241 = vmatmul.f32.gmra.mxu0 %v223
    %v242 = vpop.f32.mrf.mxu0
    %v243 = vadd.f32 0.0, %v242
    %244 = vdwg.mxu0
    %245 = vrot.lane.b32.xlu0 %v116, 64
    %v246 = vpop.permute.xlu0 %245
    %v249 = vsel %vm122, %v82, 0
    %251 = vmatpush.msra.mxu0 0.0
    %252 = vmatpush.msra.mxu0 0.0
    %253 = vmatpush.msra.mxu0 0.0
    %254 = vmatpush.msra.mxu0 0.0
    %255 = vmatpush.msra.mxu0 0.0
    %256 = vmatpush.msra.mxu0 0.0
    %257 = vmatpush.msra.mxu0 0.0
    %258 = vmatpush.msra.mxu0 0.0
    %259 = vmatpush.msra.mxu0 0.0
    %260 = vmatpush.msra.mxu0 0.0
    %261 = vmatpush.msra.mxu0 0.0
    %262 = vmatpush.msra.mxu0 0.0
    %263 = vmatpush.msra.mxu0 0.0
    %264 = vmatpush.msra.mxu0 0.0
    %265 = vmatpush.msra.mxu0 0.0
    %266 = vmatpush.msra.mxu0 %v246
    %267 = vmatmul.f32.gmra.mxu0 %v249
    %v268 = vpop.f32.mrf.mxu0
    %v269 = vadd.f32 0.0, %v268
    %270 = vdwg.mxu0
    %v271 = vadd.f32 %v194, %v243
    %v272 = vadd.f32 %v217, %v269
    %v274 = vperm.slane %v87, 0
    %v276 = vadd.f32 %v271, %v274
    %v277 = vadd.f32 %v272, %v274
    %v278 = vmax.f32 %v276, 0.0
    %v279 = vmax.f32 %v277, 0.0
    %v280 = vld [vmem:[#allocation7] sm:$0xff]
    %v281 = vld [vmem:[#allocation7 + $0x8] sm:$0xff]
    %v282 = vld [vmem:[#allocation7 + $0x10] sm:$0xff]
    %v283 = vld [vmem:[#allocation7 + $0x18] sm:$0xff]
    %v284 = vld [vmem:[%s5] sm:$0x1]
    %vm285 = vcmask 261120
    %v287 = vsel %vm285, %v278, 0
    %v290 = vsel %vm285, %v279, 0
    %292 = vmatpush.msra.mxu0 0.0
    %293 = vmatpush.msra.mxu0 0.0
    %294 = vmatpush.msra.mxu0 0.0
    %295 = vmatpush.msra.mxu0 0.0
    %296 = vmatpush.msra.mxu0 0.0
    %297 = vmatpush.msra.mxu0 0.0
    %298 = vmatpush.msra.mxu0 0.0
    %299 = vmatpush.msra.mxu0 0.0
    %300 = vmatpush.msra.mxu0 0.0
    %301 = vmatpush.msra.mxu0 0.0
    %302 = vmatpush.msra.mxu0 0.0
    %303 = vmatpush.msra.mxu0 0.0
    %304 = vmatpush.msra.mxu0 %v283
    %305 = vmatpush.msra.mxu0 %v282
    %306 = vmatpush.msra.mxu0 %v281
    %307 = vmatpush.msra.mxu0 %v280
    %308 = vmatmul.f32.gmra.mxu0 %v287
    %v309 = vpop.f32.mrf.mxu0
    %v310 = vadd.f32 0.0, %v309
    %311 = vmatmul.f32.gmra.mxu0 %v290
    %v312 = vpop.f32.mrf.mxu0
    %v313 = vadd.f32 0.0, %v312
    %314 = vdwg.mxu0
    %316 = vrot.lane.b32.xlu0 %v310, 96
    %v317 = vpop.permute.xlu0 %316
    %319 = vmatpush.msra.mxu0 0.0
    %320 = vmatpush.msra.mxu0 0.0
    %321 = vmatpush.msra.mxu0 0.0
    %322 = vmatpush.msra.mxu0 0.0
    %323 = vmatpush.msra.mxu0 0.0
    %324 = vmatpush.msra.mxu0 0.0
    %325 = vmatpush.msra.mxu0 0.0
    %326 = vmatpush.msra.mxu0 0.0
    %327 = vmatpush.msra.mxu0 0.0
    %328 = vmatpush.msra.mxu0 0.0
    %329 = vmatpush.msra.mxu0 0.0
    %330 = vmatpush.msra.mxu0 0.0
    %331 = vmatpush.msra.mxu0 0.0
    %332 = vmatpush.msra.mxu0 0.0
    %333 = vmatpush.msra.mxu0 0.0
    %334 = vmatpush.msra.mxu0 %v317
    %335 = vmatmul.f32.gmra.mxu0 %v124
    %v336 = vpop.f32.mrf.mxu0
    %v337 = vadd.f32 0.0, %v336
    %338 = vdwg.mxu0
    %340 = vrot.lane.b32.xlu0 %v313, 96
    %v341 = vpop.permute.xlu0 %340
    %343 = vmatpush.msra.mxu0 0.0
    %344 = vmatpush.msra.mxu0 0.0
    %345 = vmatpush.msra.mxu0 0.0
    %346 = vmatpush.msra.mxu0 0.0
    %347 = vmatpush.msra.mxu0 0.0
    %348 = vmatpush.msra.mxu0 0.0
    %349 = vmatpush.msra.mxu0 0.0
    %350 = vmatpush.msra.mxu0 0.0
    %351 = vmatpush.msra.mxu0 0.0
    %352 = vmatpush.msra.mxu0 0.0
    %353 = vmatpush.msra.mxu0 0.0
    %354 = vmatpush.msra.mxu0 0.0
    %355 = vmatpush.msra.mxu0 0.0
    %356 = vmatpush.msra.mxu0 0.0
    %357 = vmatpush.msra.mxu0 0.0
    %358 = vmatpush.msra.mxu0 %v341
    %359 = vmatmul.f32.gmra.mxu0 %v151
    %v360 = vpop.f32.mrf.mxu0
    %v361 = vadd.f32 0.0, %v360
    %362 = vdwg.mxu0
    %363 = vmatpush.msra.mxu0 0.0
    %364 = vmatpush.msra.mxu0 0.0
    %365 = vmatpush.msra.mxu0 0.0
    %366 = vmatpush.msra.mxu0 0.0
    %367 = vmatpush.msra.mxu0 0.0
    %368 = vmatpush.msra.mxu0 0.0
    %369 = vmatpush.msra.mxu0 0.0
    %370 = vmatpush.msra.mxu0 0.0
    %371 = vmatpush.msra.mxu0 0.0
    %372 = vmatpush.msra.mxu0 0.0
    %373 = vmatpush.msra.mxu0 0.0
    %374 = vmatpush.msra.mxu0 0.0
    %375 = vmatpush.msra.mxu0 0.0
    %376 = vmatpush.msra.mxu0 0.0
    %377 = vmatpush.msra.mxu0 0.0
    %378 = vmatpush.msra.mxu0 %v310
    %379 = vmatmul.f32.gmra.mxu0 %v174
    %v380 = vpop.f32.mrf.mxu0
    %v381 = vadd.f32 %v337, %v380
    %382 = vdwg.mxu0
    %383 = vmatpush.msra.mxu0 0.0
    %384 = vmatpush.msra.mxu0 0.0
    %385 = vmatpush.msra.mxu0 0.0
    %386 = vmatpush.msra.mxu0 0.0
    %387 = vmatpush.msra.mxu0 0.0
    %388 = vmatpush.msra.mxu0 0.0
    %389 = vmatpush.msra.mxu0 0.0
    %390 = vmatpush.msra.mxu0 0.0
    %391 = vmatpush.msra.mxu0 0.0
    %392 = vmatpush.msra.mxu0 0.0
    %393 = vmatpush.msra.mxu0 0.0
    %394 = vmatpush.msra.mxu0 0.0
    %395 = vmatpush.msra.mxu0 0.0
    %396 = vmatpush.msra.mxu0 0.0
    %397 = vmatpush.msra.mxu0 0.0
    %398 = vmatpush.msra.mxu0 %v313
    %399 = vmatmul.f32.gmra.mxu0 %v197
    %v400 = vpop.f32.mrf.mxu0
    %v401 = vadd.f32 %v361, %v400
    %402 = vdwg.mxu0
    %403 = vrot.lane.b32.xlu0 %v310, 64
    %v404 = vpop.permute.xlu0 %403
    %406 = vmatpush.msra.mxu0 0.0
    %407 = vmatpush.msra.mxu0 0.0
    %408 = vmatpush.msra.mxu0 0.0
    %409 = vmatpush.msra.mxu0 0.0
    %410 = vmatpush.msra.mxu0 0.0
    %411 = vmatpush.msra.mxu0 0.0
    %412 = vmatpush.msra.mxu0 0.0
    %413 = vmatpush.msra.mxu0 0.0
    %414 = vmatpush.msra.mxu0 0.0
    %415 = vmatpush.msra.mxu0 0.0
    %416 = vmatpush.msra.mxu0 0.0
    %417 = vmatpush.msra.mxu0 0.0
    %418 = vmatpush.msra.mxu0 0.0
    %419 = vmatpush.msra.mxu0 0.0
    %420 = vmatpush.msra.mxu0 0.0
    %421 = vmatpush.msra.mxu0 %v404
    %422 = vmatmul.f32.gmra.mxu0 %v223
    %v423 = vpop.f32.mrf.mxu0
    %v424 = vadd.f32 0.0, %v423
    %425 = vdwg.mxu0
    %426 = vrot.lane.b32.xlu0 %v313, 64
    %v427 = vpop.permute.xlu0 %426
    %429 = vmatpush.msra.mxu0 0.0
    %430 = vmatpush.msra.mxu0 0.0
    %431 = vmatpush.msra.mxu0 0.0
    %432 = vmatpush.msra.mxu0 0.0
    %433 = vmatpush.msra.mxu0 0.0
    %434 = vmatpush.msra.mxu0 0.0
    %435 = vmatpush.msra.mxu0 0.0
    %436 = vmatpush.msra.mxu0 0.0
    %437 = vmatpush.msra.mxu0 0.0
    %438 = vmatpush.msra.mxu0 0.0
    %439 = vmatpush.msra.mxu0 0.0
    %440 = vmatpush.msra.mxu0 0.0
    %441 = vmatpush.msra.mxu0 0.0
    %442 = vmatpush.msra.mxu0 0.0
    %443 = vmatpush.msra.mxu0 0.0
    %444 = vmatpush.msra.mxu0 %v427
    %445 = vmatmul.f32.gmra.mxu0 %v249
    %v446 = vpop.f32.mrf.mxu0
    %v447 = vadd.f32 0.0, %v446
    %448 = vdwg.mxu0
    %v449 = vadd.f32 %v381, %v424
    %v450 = vadd.f32 %v401, %v447
    %v452 = vperm.slane %v284, 0
    %v454 = vadd.f32 %v449, %v452
    %v455 = vadd.f32 %v450, %v452
    %v456 = vmax.f32 %v454, 0.0
    %v457 = vmax.f32 %v455, 0.0
    %v458 = vld [vmem:[%s6] sm:$0xff]
    %v459 = vld [vmem:[%s6 + $0x8] sm:$0xff]
    %v460 = vld [vmem:[%s6 + $0x10] sm:$0xff]
    %v461 = vld [vmem:[%s6 + $0x18] sm:$0xff]
    %v462 = vld [vmem:[%s7] sm:$0x1]
    %v464 = vperm.slane %v462, 0
    %v467 = vsel %vm285, %v456, 0
    %v470 = vsel %vm285, %v457, 0
    %472 = vmatpush.msra.mxu0 0.0
    %473 = vmatpush.msra.mxu0 0.0
    %474 = vmatpush.msra.mxu0 0.0
    %475 = vmatpush.msra.mxu0 0.0
    %476 = vmatpush.msra.mxu0 0.0
    %477 = vmatpush.msra.mxu0 0.0
    %478 = vmatpush.msra.mxu0 0.0
    %479 = vmatpush.msra.mxu0 0.0
    %480 = vmatpush.msra.mxu0 0.0
    %481 = vmatpush.msra.mxu0 0.0
    %482 = vmatpush.msra.mxu0 0.0
    %483 = vmatpush.msra.mxu0 0.0
    %484 = vmatpush.msra.mxu0 %v461
    %485 = vmatpush.msra.mxu0 %v460
    %486 = vmatpush.msra.mxu0 %v459
    %487 = vmatpush.msra.mxu0 %v458
    %488 = vmatmul.f32.gmra.mxu0 %v467
    %v489 = vpop.f32.mrf.mxu0
    %v490 = vadd.f32 %v464, %v489
    %491 = vmatmul.f32.gmra.mxu0 %v470
    %v492 = vpop.f32.mrf.mxu0
    %v493 = vadd.f32 %v464, %v492
    %494 = vdwg.mxu0
    %v495 = vxor.u32 %v490, 2147483648
    %v496 = vxor.u32 %v493, 2147483648
    %v497 = vmul.f32 %v495, 1.442695
    %v498 = vpow.pop %v497
    %v499 = vmul.f32 %v496, 1.442695
    %v500 = vpow.pop %v499
    %v501 = vadd.f32 %v498, 1.0
    %v502 = vadd.f32 %v500, 1.0
    %v503 = vrcp.pop %v501
    %v504 = vmul.f32 %v501, %v503
    %v505 = vsub.f32 1.0, %v504
    %v506 = vmul.f32 %v503, %v505
    %v507 = vadd.f32 %v503, %v506
    %vm508 = vweird.f32 %v501
    %vm509 = vweird.f32 %v503
    %vm510 = vmor %vm508, %vm509
    %v511 = vsel %vm510, %v503, %v507
    %v512 = vand.u32 2147483647, %v501
    %vm513 = vcmp.eq.f32.partialorder %v512, 8.507059e+37
    %v514 = vand.u32 %v501, 2147483648
    %v515 = vor.u32 1.1754944e-38, %v514
    %v516 = vsel %vm513, %v515, %v511
    %v517 = vmul.f32 1.0, %v516
    %v518 = vrcp.pop %v502
    %v519 = vmul.f32 %v502, %v518
    %v520 = vsub.f32 1.0, %v519
    %v521 = vmul.f32 %v518, %v520
    %v522 = vadd.f32 %v518, %v521
    %vm523 = vweird.f32 %v502
    %vm524 = vweird.f32 %v518
    %vm525 = vmor %vm523, %vm524
    %v526 = vsel %vm525, %v518, %v522
    %v527 = vand.u32 2147483647, %v502
    %vm528 = vcmp.eq.f32.partialorder %v527, 8.507059e+37
    %v529 = vand.u32 %v502, 2147483648
    %v530 = vor.u32 1.1754944e-38, %v529
    %v531 = vsel %vm528, %v530, %v526
    %v532 = vmul.f32 1.0, %v531
    %534 = vset.pattern.permute.xlu0 8
    %535 = vperm.xlu0 %534, %v517
    %v536 = vpop.permute.xlu0 %535
    %539 = vset.pattern.permute.xlu0 8
    %540 = vperm.xlu0 %539, %v532
    %v541 = vpop.permute.xlu0 %540
    %v543 = vmul.f32 %v536, %v490
    %v544 = vmul.f32 %v541, %v493
    %v545 = vsel %vm122, %v543, 0.0
    %v546 = vrot.slane %v545, 4
    %v547 = vadd.f32 %v545, %v546
    %v548 = vrot.slane %v547, 2
    %v549 = vadd.f32 %v547, %v548
    %v550 = vrot.slane %v549, 1
    %v551 = vadd.f32 %v549, %v550
    %v552 = vsel %vm122, %v544, 0.0
    %v553 = vrot.slane %v552, 4
    %v554 = vadd.f32 %v552, %v553
    %v555 = vrot.slane %v554, 2
    %v556 = vadd.f32 %v554, %v555
    %v557 = vrot.slane %v556, 1
    %v558 = vadd.f32 %v556, %v557
    %v559 = vrcp.pop 8.0
    %v560 = vmul.f32 8.0, %v559
    %v561 = vsub.f32 1.0, %v560
    %v562 = vmul.f32 %v559, %v561
    %v563 = vadd.f32 %v559, %v562
    %vm564 = vweird.f32 %v559
    %v565 = vsel %vm564, %v559, %v563
    %v566 = vmul.f32 %v551, %v565
    %v567 = vmul.f32 %v558, %v565
    %vm570 = vcmask 1041409
    %v571 = vsel %vm570, %v567, %v566
    %vm573 = vcmask 58368
    %574 = vst.msk [vmem:[#allocation8] sm:$0x3] %vm573, %v571
    // Predicated region
    $region46: #{tpu_custom_call.1} parent=1 // pred_check
      _
    $region47: #{tpu_custom_call.1} parent=1 // pred_check_branch
      %576 = sbr.rel (0) target = $region49
    $region48: #{tpu_custom_call.1} parent=1 // pred_region
      %578 = vsyncadd [#allocation4], 0
      %s580 = sshll.u32 [#allocation8], 4
      %s581 = int_to_ptr.vmem [resolvable:$true] %s580
      %s582 = sshll.u32 %s8, 4
      %s583 = int_to_ptr.hbm [resolvable:$true] %s582
      %585 = dma.vmem_to_hbm [thread:$0]  %s581, 32, %s583, [#allocation4]
    $region49: #{tpu_custom_call.1} parent=1 // pred_fallthru
      _
    // Predicated region
    $region50: #{tpu_custom_call.1} parent=1 // pred_check
      _
    $region51: #{tpu_custom_call.1} parent=1 // pred_check_branch
      %587 = sbr.rel (0) target = $region53
    $region52: #{tpu_custom_call.1} parent=1 // pred_region
      %589 = dma.done [#allocation4], 32
    $region53: #{tpu_custom_call.1} parent=1 // pred_fallthru
      _
    %590 = vsyncpa [#allocation3], 1
    %591 = vsyncpa [#allocation6], 1
    %592 = vsyncpa [#allocation4], 1

</llo_original>
